<compile_context>
chip_gen: v7x
topology: tpu7x:2x2x1
jax: 0.10.0
libtpu: 0.0.40
codegen_flags: <defaults>
</compile_context>

<pallas_src>
import jax
import jax.numpy as jnp
from jax.experimental import pallas as pl
from jax.experimental.pallas import tpu as pltpu

# ----------------------------- config (small) ------------------------------
B = 16         # batch
TB = 16        # batch tile per grid step (== B -> grid=(1,) at toy shapes)
S = 16         # sequence length (module default 256, scaled down)
H = 128        # hidden size (module default 768, scaled down)
D1 = 256       # first dense layer width (matches module)
LANE = 128     # lane-dense output width
VOCAB = 64
TYPE_VOCAB = 2
LN_EPS = 1e-5
LEAKY_SLOPE = 0.01

# rows in the packed small-parameter block
_ROW_POOL_B, _ROW_GAMMA, _ROW_BETA, _ROW_B1, _ROW_W2, _ROW_B2 = 0, 1, 2, 3, 4, 5
_PACK_ROWS = 8  # padded to a full sublane group


# ------------------------------ Pallas kernel ------------------------------
def toxicity_head_kernel(
    emb_ref,      # [TB, S, H]  bf16  embedded sequence tile
    mask_ref,     # [TB, S, 1]  f32   attention mask tile (lane dim = 1)
    pool_w_ref,   # [H, H]      bf16  BERT pooler dense weight
    w1_ref,       # [H, D1]     bf16  dense[0] weight
    packed_ref,   # [8, D1]     f32   packed small params (see rows above)
    out_ref,      # [TB, LANE]  f32   preds broadcast across lanes
):
    emb = emb_ref[...]                                    # [TB, S, H] bf16
    mask3 = mask_ref[...]                                 # [TB, S, 1] f32

    # ---- stand-in encoder output: attention-mask-weighted mean over seq ----
    # Mask broadcast is along lanes only (mask already [TB, S, 1]); multiply in
    # bf16, accumulate the sequence reduction in f32.
    # TODO(synk): at real shapes (S=256, H=768) chunk this reduction over S
    # (inner pipelined loop) instead of holding the full [TB, S, H] tile.
    weighted = emb * mask3.astype(jnp.bfloat16)           # [TB, S, H] bf16
    summed = jnp.sum(weighted.astype(jnp.float32), axis=1)  # [TB, H] f32
    denom = jnp.maximum(jnp.sum(mask3, axis=1), 1.0)       # [TB, 1] f32
    seq_repr = summed / denom                              # [TB, H] f32

    # ---- unpack small params (single VMEM tile) ----
    packed = packed_ref[...]                              # [8, D1]
    pool_b = packed[_ROW_POOL_B:_ROW_POOL_B + 1, :H]      # [1, H]
    gamma = packed[_ROW_GAMMA:_ROW_GAMMA + 1, :H]         # [1, H]
    beta = packed[_ROW_BETA:_ROW_BETA + 1, :H]            # [1, H]
    b1 = packed[_ROW_B1:_ROW_B1 + 1, :]                   # [1, D1]
    w2_row = packed[_ROW_W2:_ROW_W2 + 1, :]               # [1, D1]
    b2 = packed[_ROW_B2:_ROW_B2 + 1, 0:1]                 # [1, 1]

    # ---- BERT pooler: tanh(dense(seq_repr)) -> pooled_output [TB, H] ----
    # bf16 MXU inputs, f32 accumulate.
    pooled = jnp.tanh(
        jnp.dot(
            seq_repr.astype(jnp.bfloat16),
            pool_w_ref[...],
            preferred_element_type=jnp.float32,
        )
        + pool_b
    )

    # ---- LayerNorm over the hidden axis (f32) ----
    mean = jnp.mean(pooled, axis=-1, keepdims=True)
    var = jnp.mean((pooled - mean) ** 2, axis=-1, keepdims=True)
    xn = (pooled - mean) * jax.lax.rsqrt(var + LN_EPS)
    xn = xn * gamma + beta

    # ---- Dropout (eval mode): identity ----

    # ---- dense[0]: Linear(H, 256) + LeakyReLU(0.01) ----
    h1 = (
        jnp.dot(
            xn.astype(jnp.bfloat16),
            w1_ref[...],
            preferred_element_type=jnp.float32,
        )
        + b1
    )
    h1 = jnp.where(h1 > 0, h1, LEAKY_SLOPE * h1)

    # ---- Dropout (eval mode): identity ----

    # ---- dense[3]: Linear(256, 1) as a VPU/XLU lane reduction (no MXU) ----
    preds = jnp.sum(h1 * w2_row, axis=-1, keepdims=True) + b2   # [TB, 1]

    # Lane-dense unmasked store; caller slices column 0.
    out_ref[...] = jnp.broadcast_to(preds, out_ref.shape)


# ------------------------------ wrapper ------------------------------------
def toxicity_model_forward(input_ids, token_type_ids, attention_mask, p):
    """Embedding gather in plain JAX; pooler + classification head in Pallas."""
    # TODO(synk): the 12-layer RoBERTa self-attention encoder has no small
    # equivalent here; deterministic embeddings + masked mean stand in for
    # sequence_output feeding the pooler.
    # TODO(synk): at real shapes (S=256, H=768) fuse this gather into the
    # kernel (scalar-prefetched ids + DMA gather from HBM word_emb), which
    # removes the [B, S, H] write-then-reread HBM round trip of the embedded
    # sequence — the single largest source of bytes moved at production size.
    emb = (
        p["word_emb"][input_ids]
        + p["type_emb"][token_type_ids]
        + p["pos_emb"][None, : input_ids.shape[1], :]
    ).astype(jnp.bfloat16)                                # [B, S, H] bf16 DMA
    # Mask is passed [B, S, 1] so its broadcast against [B, S, H] inside the
    # kernel is lane-only (no XLU relayout).
    mask_f = attention_mask.astype(jnp.float32)[:, :, None]   # [B, S, 1]

    b, s = input_ids.shape
    h = emb.shape[-1]
    assert b % TB == 0
    n_blocks = b // TB   # == 1 at toy shapes: no grid overhead, full MXU M rows
    # TODO(synk): at real shapes raise TB to 128-256 (pad batch), keep
    # n_blocks >= 2 so the "parallel" axis shards onto both v7x TensorCores,
    # size the double-buffered emb tile against v7x's 64 MiB VMEM (set
    # vmem_limit_bytes explicitly), and mark the constant weight blocks
    # pipeline_mode=pl.Buffered(1) so they are not double-buffered.

    # Pack all small 1-D params into one [8, D1] tile (one DMA, one VMEM alloc).
    packed = jnp.zeros((_PACK_ROWS, D1), jnp.float32)
    packed = packed.at[_ROW_POOL_B, :h].set(p["pool_b"])
    packed = packed.at[_ROW_GAMMA, :h].set(p["ln_gamma"])
    packed = packed.at[_ROW_BETA, :h].set(p["ln_beta"])
    packed = packed.at[_ROW_B1, :].set(p["b1"])
    packed = packed.at[_ROW_W2, :].set(p["w2"])
    packed = packed.at[_ROW_B2, 0].set(p["b2"])

    grid_spec = pltpu.PrefetchScalarGridSpec(
        num_scalar_prefetch=0,
        grid=(n_blocks,),
        in_specs=[
            pl.BlockSpec((TB, s, h), lambda i: (i, 0, 0)),     # emb tile (bf16)
            pl.BlockSpec((TB, s, 1), lambda i: (i, 0, 0)),     # mask tile
            pl.BlockSpec((h, h), lambda i: (0, 0)),            # pooler W (resident)
            pl.BlockSpec((h, D1), lambda i: (0, 0)),           # dense[0] W (resident)
            pl.BlockSpec((_PACK_ROWS, D1), lambda i: (0, 0)),  # packed small params
        ],
        out_specs=pl.BlockSpec((TB, LANE), lambda i: (i, 0)),
    )

    out = pl.pallas_call(
        toxicity_head_kernel,
        out_shape=jax.ShapeDtypeStruct((b, LANE), jnp.float32),
        grid_spec=grid_spec,
        compiler_params=pltpu.CompilerParams(
            dimension_semantics=("parallel",),
        ),
    )(
        emb,
        mask_f,
        p["pool_w"].astype(jnp.bfloat16),
        p["w1"].astype(jnp.bfloat16),
        packed,
    )
    return out[:, :1]                                       # [B, 1]


# ----------------------------- param construction --------------------------
def init_params(key):
    ks = jax.random.split(key, 6)
    scale = 0.02
    return {
        "word_emb": scale * jax.random.normal(ks[0], (VOCAB, H), jnp.float32),
        "type_emb": scale * jax.random.normal(ks[1], (TYPE_VOCAB, H), jnp.float32),
        "pos_emb": scale * jax.random.normal(ks[2], (S, H), jnp.float32),
        "pool_w": scale * jax.random.normal(ks[3], (H, H), jnp.float32),
        "pool_b": jnp.zeros((H,), jnp.float32),
        "ln_gamma": jnp.ones((H,), jnp.float32),
        "ln_beta": jnp.zeros((H,), jnp.float32),
        "w1": scale * jax.random.normal(ks[4], (H, D1), jnp.float32),
        "b1": jnp.zeros((D1,), jnp.float32),
        "w2": scale * jax.random.normal(ks[5], (D1,), jnp.float32),
        "b2": jnp.zeros((), jnp.float32),
    }


if __name__ == "__main__":
    key = jax.random.PRNGKey(0)
    pkey, ikey, _ = jax.random.split(key, 3)

    params = init_params(pkey)

    input_ids = jax.random.randint(ikey, (B, S), 0, VOCAB, dtype=jnp.int32)
    token_type_ids = jnp.zeros((B, S), jnp.int32)
    # mask out the last 4 positions of every sequence (padding)
    attention_mask = jnp.concatenate(
        [jnp.ones((B, S - 4), jnp.int32), jnp.zeros((B, 4), jnp.int32)], axis=1
    )

    preds = jax.jit(lambda a, b, c: toxicity_model_forward(a, b, c, params))(
        input_ids, token_type_ids, attention_mask
    )
    preds = jax.block_until_ready(preds)
    assert preds.shape == (B, 1) and preds.dtype == jnp.float32
    print("KERNEL_OK")
</pallas_src>

<mosaic_0001>
module attributes {stable_mosaic.version = 11 : i64} {
  func.func @toxicity_head_kernel(%arg0: i32, %arg1: memref<16x16x128xbf16, #tpu.memory_space<vmem>>, %arg2: memref<16x16x1xf32, #tpu.memory_space<vmem>>, %arg3: memref<128x128xbf16, #tpu.memory_space<vmem>>, %arg4: memref<128x256xbf16, #tpu.memory_space<vmem>>, %arg5: memref<8x256xf32, #tpu.memory_space<vmem>>, %arg6: memref<16x128xf32, #tpu.memory_space<vmem>>) attributes {dimension_semantics = [#tpu.dimension_semantics<parallel>], iteration_bounds = array<i64: 1>, scalar_prefetch = 0 : i64, scratch_operands = 0 : i64, tpu.core_type = #tpu.core_type<tc>, window_params = [{transform_indices = @transform_0, window_bounds = array<i64: 16, 16, 128>}, {transform_indices = @transform_1, window_bounds = array<i64: 16, 16, 1>}, {pipeline_mode = #tpu.pipeline_mode<synchronous>, transform_indices = @transform_2, window_bounds = array<i64: 128, 128>}, {pipeline_mode = #tpu.pipeline_mode<synchronous>, transform_indices = @transform_3, window_bounds = array<i64: 128, 256>}, {pipeline_mode = #tpu.pipeline_mode<synchronous>, transform_indices = @transform_4, window_bounds = array<i64: 8, 256>}, {transform_indices = @transform_5, window_bounds = array<i64: 16, 128>}]} {
    %c0 = arith.constant 0 : index
    %c0_0 = arith.constant 0 : index
    %c0_1 = arith.constant 0 : index
    %0 = vector.load %arg1[%c0, %c0_0, %c0_1] : memref<16x16x128xbf16, #tpu.memory_space<vmem>>, vector<16x16x128xbf16>
    %c0_2 = arith.constant 0 : index
    %c0_3 = arith.constant 0 : index
    %c0_4 = arith.constant 0 : index
    %1 = vector.load %arg2[%c0_2, %c0_3, %c0_4] : memref<16x16x1xf32, #tpu.memory_space<vmem>>, vector<16x16x1xf32>
    %2 = arith.truncf %1 : vector<16x16x1xf32> to vector<16x16x1xbf16>
    %3 = vector.broadcast %2 : vector<16x16x1xbf16> to vector<16x16x128xbf16>
    %4 = arith.mulf %0, %3 : vector<16x16x128xbf16>
    %5 = arith.extf %4 : vector<16x16x128xbf16> to vector<16x16x128xf32>
    %cst = arith.constant dense<0.000000e+00> : vector<16x128xf32>
    %6 = vector.multi_reduction <add>, %5, %cst [1] : vector<16x16x128xf32> to vector<16x128xf32>
    %cst_5 = arith.constant dense<0.000000e+00> : vector<16x1xf32>
    %7 = vector.multi_reduction <add>, %1, %cst_5 [1] : vector<16x16x1xf32> to vector<16x1xf32>
    %cst_6 = arith.constant 1.000000e+00 : f32
    %8 = vector.broadcast %cst_6 : f32 to vector<16x1xf32>
    %9 = arith.maximumf %7, %8 : vector<16x1xf32>
    %10 = vector.broadcast %9 : vector<16x1xf32> to vector<16x128xf32>
    %11 = arith.divf %6, %10 : vector<16x128xf32>
    %c0_7 = arith.constant 0 : index
    %c0_8 = arith.constant 0 : index
    %12 = vector.load %arg5[%c0_7, %c0_8] : memref<8x256xf32, #tpu.memory_space<vmem>>, vector<8x256xf32>
    %13 = vector.extract_strided_slice %12 {offsets = [0, 0], sizes = [1, 128], strides = [1, 1]} : vector<8x256xf32> to vector<1x128xf32>
    %14 = vector.extract_strided_slice %12 {offsets = [1, 0], sizes = [1, 128], strides = [1, 1]} : vector<8x256xf32> to vector<1x128xf32>
    %15 = vector.extract_strided_slice %12 {offsets = [2, 0], sizes = [1, 128], strides = [1, 1]} : vector<8x256xf32> to vector<1x128xf32>
    %16 = vector.extract_strided_slice %12 {offsets = [3, 0], sizes = [1, 256], strides = [1, 1]} : vector<8x256xf32> to vector<1x256xf32>
    %17 = vector.extract_strided_slice %12 {offsets = [4, 0], sizes = [1, 256], strides = [1, 1]} : vector<8x256xf32> to vector<1x256xf32>
    %18 = vector.extract_strided_slice %12 {offsets = [5, 0], sizes = [1, 1], strides = [1, 1]} : vector<8x256xf32> to vector<1x1xf32>
    %19 = arith.truncf %11 : vector<16x128xf32> to vector<16x128xbf16>
    %c0_9 = arith.constant 0 : index
    %c0_10 = arith.constant 0 : index
    %20 = vector.load %arg3[%c0_9, %c0_10] : memref<128x128xbf16, #tpu.memory_space<vmem>>, vector<128x128xbf16>
    %cst_11 = arith.constant dense<0.000000e+00> : vector<16x128xf32>
    %21 = tpu.matmul %19, %20, %cst_11 {dimension_numbers = #tpu.dot_dimension_numbers<[1], [0], [0], [1], [0, 0, 1, 1], [], []>} : vector<16x128xbf16>, vector<128x128xbf16>, vector<16x128xf32> -> vector<16x128xf32>
    %22 = vector.broadcast %13 : vector<1x128xf32> to vector<16x128xf32>
    %23 = arith.addf %21, %22 : vector<16x128xf32>
    %24 = math.tanh %23 : vector<16x128xf32>
    %cst_12 = arith.constant dense<0.000000e+00> : vector<16xf32>
    %25 = vector.multi_reduction <add>, %24, %cst_12 [1] : vector<16x128xf32> to vector<16xf32>
    %26 = vector.shape_cast %25 : vector<16xf32> to vector<16x1xf32>
    %cst_13 = arith.constant 1.280000e+02 : f32
    %27 = vector.broadcast %cst_13 : f32 to vector<16x1xf32>
    %28 = arith.divf %26, %27 : vector<16x1xf32>
    %29 = vector.broadcast %28 : vector<16x1xf32> to vector<16x128xf32>
    %30 = arith.subf %24, %29 : vector<16x128xf32>
    %31 = arith.mulf %30, %30 : vector<16x128xf32>
    %cst_14 = arith.constant dense<0.000000e+00> : vector<16xf32>
    %32 = vector.multi_reduction <add>, %31, %cst_14 [1] : vector<16x128xf32> to vector<16xf32>
    %33 = vector.shape_cast %32 : vector<16xf32> to vector<16x1xf32>
    %cst_15 = arith.constant 1.280000e+02 : f32
    %34 = vector.broadcast %cst_15 : f32 to vector<16x1xf32>
    %35 = arith.divf %33, %34 : vector<16x1xf32>
    %36 = vector.broadcast %28 : vector<16x1xf32> to vector<16x128xf32>
    %37 = arith.subf %24, %36 : vector<16x128xf32>
    %cst_16 = arith.constant 9.99999974E-6 : f32
    %38 = vector.broadcast %cst_16 : f32 to vector<16x1xf32>
    %39 = arith.addf %35, %38 : vector<16x1xf32>
    %40 = math.rsqrt %39 : vector<16x1xf32>
    %41 = vector.broadcast %40 : vector<16x1xf32> to vector<16x128xf32>
    %42 = arith.mulf %37, %41 : vector<16x128xf32>
    %43 = vector.broadcast %14 : vector<1x128xf32> to vector<16x128xf32>
    %44 = arith.mulf %42, %43 : vector<16x128xf32>
    %45 = vector.broadcast %15 : vector<1x128xf32> to vector<16x128xf32>
    %46 = arith.addf %44, %45 : vector<16x128xf32>
    %47 = arith.truncf %46 : vector<16x128xf32> to vector<16x128xbf16>
    %c0_17 = arith.constant 0 : index
    %c0_18 = arith.constant 0 : index
    %48 = vector.load %arg4[%c0_17, %c0_18] : memref<128x256xbf16, #tpu.memory_space<vmem>>, vector<128x256xbf16>
    %cst_19 = arith.constant dense<0.000000e+00> : vector<16x256xf32>
    %49 = tpu.matmul %47, %48, %cst_19 {dimension_numbers = #tpu.dot_dimension_numbers<[1], [0], [0], [1], [0, 0, 1, 1], [], []>} : vector<16x128xbf16>, vector<128x256xbf16>, vector<16x256xf32> -> vector<16x256xf32>
    %50 = vector.broadcast %16 : vector<1x256xf32> to vector<16x256xf32>
    %51 = arith.addf %49, %50 : vector<16x256xf32>
    %cst_20 = arith.constant 0.000000e+00 : f32
    %52 = vector.broadcast %cst_20 : f32 to vector<16x256xf32>
    %53 = arith.cmpf ogt, %51, %52 : vector<16x256xf32>
    %cst_21 = arith.constant 0.00999999977 : f32
    %54 = vector.broadcast %cst_21 : f32 to vector<16x256xf32>
    %55 = arith.mulf %54, %51 : vector<16x256xf32>
    %56 = arith.select %53, %51, %55 : vector<16x256xi1>, vector<16x256xf32>
    %57 = vector.broadcast %17 : vector<1x256xf32> to vector<16x256xf32>
    %58 = arith.mulf %56, %57 : vector<16x256xf32>
    %cst_22 = arith.constant dense<0.000000e+00> : vector<16xf32>
    %59 = vector.multi_reduction <add>, %58, %cst_22 [1] : vector<16x256xf32> to vector<16xf32>
    %60 = vector.shape_cast %59 : vector<16xf32> to vector<16x1xf32>
    %61 = vector.broadcast %18 : vector<1x1xf32> to vector<16x1xf32>
    %62 = arith.addf %60, %61 : vector<16x1xf32>
    %63 = vector.shape_cast %62 : vector<16x1xf32> to vector<16x1xf32>
    %64 = vector.broadcast %63 : vector<16x1xf32> to vector<16x128xf32>
    %c0_23 = arith.constant 0 : index
    %c0_24 = arith.constant 0 : index
    %65 = vector.load %arg6[%c0_23, %c0_24] : memref<16x128xf32, #tpu.memory_space<vmem>>, vector<16x128xf32>
    tpu.vector_store %arg6[%c0_23, %c0_24], %64 {strides = array<i32>} : memref<16x128xf32, #tpu.memory_space<vmem>>, vector<16x128xf32>,
    return
  }
  func.func @transform_0(%arg0: i32) -> (i32, i32, i32) {
    %c0_i32 = arith.constant 0 : i32
    %c0_i32_0 = arith.constant 0 : i32
    %c0_i32_1 = arith.constant 0 : i32
    return %arg0, %c0_i32, %c0_i32_0 : i32, i32, i32
  }
  func.func @transform_1(%arg0: i32) -> (i32, i32, i32) {
    %c0_i32 = arith.constant 0 : i32
    %c0_i32_0 = arith.constant 0 : i32
    %c0_i32_1 = arith.constant 0 : i32
    return %arg0, %c0_i32, %c0_i32_0 : i32, i32, i32
  }
  func.func @transform_2(%arg0: i32) -> (i32, i32) {
    %c0_i32 = arith.constant 0 : i32
    %c0_i32_0 = arith.constant 0 : i32
    %c0_i32_1 = arith.constant 0 : i32
    return %c0_i32, %c0_i32_0 : i32, i32
  }
  func.func @transform_3(%arg0: i32) -> (i32, i32) {
    %c0_i32 = arith.constant 0 : i32
    %c0_i32_0 = arith.constant 0 : i32
    %c0_i32_1 = arith.constant 0 : i32
    return %c0_i32, %c0_i32_0 : i32, i32
  }
  func.func @transform_4(%arg0: i32) -> (i32, i32) {
    %c0_i32 = arith.constant 0 : i32
    %c0_i32_0 = arith.constant 0 : i32
    %c0_i32_1 = arith.constant 0 : i32
    return %c0_i32, %c0_i32_0 : i32, i32
  }
  func.func @transform_5(%arg0: i32) -> (i32, i32) {
    %c0_i32 = arith.constant 0 : i32
    %c0_i32_0 = arith.constant 0 : i32
    return %arg0, %c0_i32 : i32, i32
  }
}

</mosaic_0001>

<llo_original>
// kernel: _lambda_.1
$region0: #{_lambda_.1}
  #allocation0 [shape = 'u32[]', space=smem, size = 0x4, offset = 0x4, fixed_abs, tag = 'smem constant byte address 0x4 - core index']
  #allocation1 [shape = 'u32[144,128]{1,0:T(1,128)}', space=vmem, size = 0x12000, scoped, tag = 'internal scratch']
  %s0 = inlined_call_operand.vmem [shape: bf16[16,16,128], index: 0, kind: input, shape index: {}]
  %s1 = inlined_call_operand.vmem [shape: f32[16,16,1], index: 1, kind: input, shape index: {}]
  %s2 = inlined_call_operand.vmem [shape: bf16[128,128], index: 2, kind: input, shape index: {}]
  %s3 = inlined_call_operand.vmem [shape: bf16[128,256], index: 3, kind: input, shape index: {}]
  %s4 = inlined_call_operand.vmem [shape: f32[8,256], index: 4, kind: input, shape index: {}]
  %s5 = inlined_call_operand.vmem [shape: f32[16,128], index: 5, kind: output, shape index: {}]
  %s6 = sld [smem:[#allocation0]]
  $region30: #{_lambda_.1} parent=0
    _
  %s8 = ssub.s32 1, %s6
  %s9 = scalar_select 0, %s8, %s6
  // Predicated region
  $region2: #{_lambda_.1} parent=0 // pred_check
    _
  $region3: #{_lambda_.1} parent=0 // pred_check_branch
    %11 = sbr.rel (0) target = $region5
  $region4: #{_lambda_.1} parent=0 // pred_region
    _
  $region5: #{_lambda_.1} parent=0 // pred_fallthru
    _
  // Predicated region
  $region6: #{_lambda_.1} parent=0 // pred_check
    _
  $region7: #{_lambda_.1} parent=0 // pred_check_branch
    %13 = sbr.rel (0) target = $region9
  $region8: #{_lambda_.1} parent=0 // pred_region
    _
  $region9: #{_lambda_.1} parent=0 // pred_fallthru
    _
  // Predicated region
  $region10: #{_lambda_.1} parent=0 // pred_check
    _
  $region11: #{_lambda_.1} parent=0 // pred_check_branch
    %15 = sbr.rel (0) target = $region13
  $region12: #{_lambda_.1} parent=0 // pred_region
    _
  $region13: #{_lambda_.1} parent=0 // pred_fallthru
    _
  // Predicated region
  $region14: #{_lambda_.1} parent=0 // pred_check
    _
  $region15: #{_lambda_.1} parent=0 // pred_check_branch
    %17 = sbr.rel (0) target = $region17
  $region16: #{_lambda_.1} parent=0 // pred_region
    _
  $region17: #{_lambda_.1} parent=0 // pred_fallthru
    _
  // Predicated region
  $region18: #{_lambda_.1} parent=0 // pred_check
    _
  $region19: #{_lambda_.1} parent=0 // pred_check_branch
    %19 = sbr.rel (0) target = $region21
  $region20: #{_lambda_.1} parent=0 // pred_region
    _
  $region21: #{_lambda_.1} parent=0 // pred_fallthru
    _
  %v21 = vld [vmem:[%s0] sm:$0xf]
  %v22 = vld [vmem:[%s0 + $0x4] sm:$0xf]
  %v23 = vld [vmem:[%s0 + $0x8] sm:$0xf]
  %v24 = vld [vmem:[%s0 + $0xc] sm:$0xf]
  %v25 = vld [vmem:[%s0 + $0x10] sm:$0xf]
  %v26 = vld [vmem:[%s0 + $0x14] sm:$0xf]
  %v27 = vld [vmem:[%s0 + $0x18] sm:$0xf]
  %v28 = vld [vmem:[%s0 + $0x1c] sm:$0xf]
  %v29 = vld [vmem:[%s0 + $0x20] sm:$0xf]
  %v30 = vld [vmem:[%s0 + $0x24] sm:$0xf]
  %v31 = vld [vmem:[%s0 + $0x28] sm:$0xf]
  %v32 = vld [vmem:[%s0 + $0x2c] sm:$0xf]
  %v33 = vld [vmem:[%s0 + $0x30] sm:$0xf]
  %v34 = vld [vmem:[%s0 + $0x34] sm:$0xf]
  %v35 = vld [vmem:[%s0 + $0x38] sm:$0xf]
  %v36 = vld [vmem:[%s0 + $0x3c] sm:$0xf]
  %v37 = vld [vmem:[%s0 + $0x40] sm:$0xf]
  %v38 = vld [vmem:[%s0 + $0x44] sm:$0xf]
  %v39 = vld [vmem:[%s0 + $0x48] sm:$0xf]
  %v40 = vld [vmem:[%s0 + $0x4c] sm:$0xf]
  %v41 = vld [vmem:[%s0 + $0x50] sm:$0xf]
  %v42 = vld [vmem:[%s0 + $0x54] sm:$0xf]
  %v43 = vld [vmem:[%s0 + $0x58] sm:$0xf]
  %v44 = vld [vmem:[%s0 + $0x5c] sm:$0xf]
  %v45 = vld [vmem:[%s0 + $0x60] sm:$0xf]
  %v46 = vld [vmem:[%s0 + $0x64] sm:$0xf]
  %v47 = vld [vmem:[%s0 + $0x68] sm:$0xf]
  %v48 = vld [vmem:[%s0 + $0x6c] sm:$0xf]
  %v49 = vld [vmem:[%s0 + $0x70] sm:$0xf]
  %v50 = vld [vmem:[%s0 + $0x74] sm:$0xf]
  %v51 = vld [vmem:[%s0 + $0x78] sm:$0xf]
  %v52 = vld [vmem:[%s0 + $0x7c] sm:$0xf]
  %v53 = vld [vmem:[%s1] sm:$0xff]
  %v54 = vld [vmem:[%s1 + $0x8] sm:$0xff]
  %v55 = vld [vmem:[%s1 + $0x10] sm:$0xff]
  %v56 = vld [vmem:[%s1 + $0x18] sm:$0xff]
  %v57 = vld [vmem:[%s1 + $0x20] sm:$0xff]
  %v58 = vld [vmem:[%s1 + $0x28] sm:$0xff]
  %v59 = vld [vmem:[%s1 + $0x30] sm:$0xff]
  %v60 = vld [vmem:[%s1 + $0x38] sm:$0xff]
  %v61 = vld [vmem:[%s1 + $0x40] sm:$0xff]
  %v62 = vld [vmem:[%s1 + $0x48] sm:$0xff]
  %v63 = vld [vmem:[%s1 + $0x50] sm:$0xff]
  %v64 = vld [vmem:[%s1 + $0x58] sm:$0xff]
  %v65 = vld [vmem:[%s1 + $0x60] sm:$0xff]
  %v66 = vld [vmem:[%s1 + $0x68] sm:$0xff]
  %v67 = vld [vmem:[%s1 + $0x70] sm:$0xff]
  %v68 = vld [vmem:[%s1 + $0x78] sm:$0xff]
  %v69 = vld [vmem:[%s1 + $0x80] sm:$0xff]
  %v70 = vld [vmem:[%s1 + $0x88] sm:$0xff]
  %v71 = vld [vmem:[%s1 + $0x90] sm:$0xff]
  %v72 = vld [vmem:[%s1 + $0x98] sm:$0xff]
  %v73 = vld [vmem:[%s1 + $0xa0] sm:$0xff]
  %v74 = vld [vmem:[%s1 + $0xa8] sm:$0xff]
  %v75 = vld [vmem:[%s1 + $0xb0] sm:$0xff]
  %v76 = vld [vmem:[%s1 + $0xb8] sm:$0xff]
  %v77 = vld [vmem:[%s1 + $0xc0] sm:$0xff]
  %v78 = vld [vmem:[%s1 + $0xc8] sm:$0xff]
  %v79 = vld [vmem:[%s1 + $0xd0] sm:$0xff]
  %v80 = vld [vmem:[%s1 + $0xd8] sm:$0xff]
  %v81 = vld [vmem:[%s1 + $0xe0] sm:$0xff]
  %v82 = vld [vmem:[%s1 + $0xe8] sm:$0xff]
  %v83 = vld [vmem:[%s1 + $0xf0] sm:$0xff]
  %v84 = vld [vmem:[%s1 + $0xf8] sm:$0xff]
  %v85 = vpack.c.bf16 %v54, %v53
  %v86 = vpack.c.bf16 %v56, %v55
  %v87 = vpack.c.bf16 %v58, %v57
  %v88 = vpack.c.bf16 %v60, %v59
  %v89 = vpack.c.bf16 %v62, %v61
  %v90 = vpack.c.bf16 %v64, %v63
  %v91 = vpack.c.bf16 %v66, %v65
  %v92 = vpack.c.bf16 %v68, %v67
  %v93 = vpack.c.bf16 %v70, %v69
  %v94 = vpack.c.bf16 %v72, %v71
  %v95 = vpack.c.bf16 %v74, %v73
  %v96 = vpack.c.bf16 %v76, %v75
  %v97 = vpack.c.bf16 %v78, %v77
  %v98 = vpack.c.bf16 %v80, %v79
  %v99 = vpack.c.bf16 %v82, %v81
  %v100 = vpack.c.bf16 %v84, %v83
  %102 = vset.pattern.permute.xlu0 0
  %103 = vperm.xlu0 %102, %v85
  %v104 = vpop.permute.xlu0 %103
  %106 = vset.pattern.permute.xlu0 0
  %107 = vperm.xlu0 %106, %v86
  %v108 = vpop.permute.xlu0 %107
  %110 = vset.pattern.permute.xlu0 0
  %111 = vperm.xlu0 %110, %v87
  %v112 = vpop.permute.xlu0 %111
  %114 = vset.pattern.permute.xlu0 0
  %115 = vperm.xlu0 %114, %v88
  %v116 = vpop.permute.xlu0 %115
  %118 = vset.pattern.permute.xlu0 0
  %119 = vperm.xlu0 %118, %v89
  %v120 = vpop.permute.xlu0 %119
  %122 = vset.pattern.permute.xlu0 0
  %123 = vperm.xlu0 %122, %v90
  %v124 = vpop.permute.xlu0 %123
  %126 = vset.pattern.permute.xlu0 0
  %127 = vperm.xlu0 %126, %v91
  %v128 = vpop.permute.xlu0 %127
  %130 = vset.pattern.permute.xlu0 0
  %131 = vperm.xlu0 %130, %v92
  %v132 = vpop.permute.xlu0 %131
  %134 = vset.pattern.permute.xlu0 0
  %135 = vperm.xlu0 %134, %v93
  %v136 = vpop.permute.xlu0 %135
  %138 = vset.pattern.permute.xlu0 0
  %139 = vperm.xlu0 %138, %v94
  %v140 = vpop.permute.xlu0 %139
  %142 = vset.pattern.permute.xlu0 0
  %143 = vperm.xlu0 %142, %v95
  %v144 = vpop.permute.xlu0 %143
  %146 = vset.pattern.permute.xlu0 0
  %147 = vperm.xlu0 %146, %v96
  %v148 = vpop.permute.xlu0 %147
  %150 = vset.pattern.permute.xlu0 0
  %151 = vperm.xlu0 %150, %v97
  %v152 = vpop.permute.xlu0 %151
  %154 = vset.pattern.permute.xlu0 0
  %155 = vperm.xlu0 %154, %v98
  %v156 = vpop.permute.xlu0 %155
  %158 = vset.pattern.permute.xlu0 0
  %159 = vperm.xlu0 %158, %v99
  %v160 = vpop.permute.xlu0 %159
  %162 = vset.pattern.permute.xlu0 0
  %163 = vperm.xlu0 %162, %v100
  %v164 = vpop.permute.xlu0 %163
  %v182 = vunpack.c.l.s4 839922192
  %v183 = vunpack.c.0.s8 %v182
  %v184 = vlaneseq
  %v185 = vshrl.u32 %v184, 7
  %v186 = vsub.s32 %v183, %v185
  %v187 = vrot.slane %v104, %v186
  %v189 = vunpack.c.l.s4 1985246804
  %v190 = vunpack.c.0.s8 %v189
  %v191 = vlaneseq
  %v192 = vshrl.u32 %v191, 7
  %v193 = vsub.s32 %v190, %v192
  %v194 = vrot.slane %v104, %v193
  %v196 = vunpack.c.l.s4 839922192
  %v197 = vunpack.c.0.s8 %v196
  %v198 = vlaneseq
  %v199 = vshrl.u32 %v198, 7
  %v200 = vsub.s32 %v197, %v199
  %v201 = vrot.slane %v108, %v200
  %v203 = vunpack.c.l.s4 1985246804
  %v204 = vunpack.c.0.s8 %v203
  %v205 = vlaneseq
  %v206 = vshrl.u32 %v205, 7
  %v207 = vsub.s32 %v204, %v206
  %v208 = vrot.slane %v108, %v207
  %v210 = vunpack.c.l.s4 839922192
  %v211 = vunpack.c.0.s8 %v210
  %v212 = vlaneseq
  %v213 = vshrl.u32 %v212, 7
  %v214 = vsub.s32 %v211, %v213
  %v215 = vrot.slane %v112, %v214
  %v217 = vunpack.c.l.s4 1985246804
  %v218 = vunpack.c.0.s8 %v217
  %v219 = vlaneseq
  %v220 = vshrl.u32 %v219, 7
  %v221 = vsub.s32 %v218, %v220
  %v222 = vrot.slane %v112, %v221
  %v224 = vunpack.c.l.s4 839922192
  %v225 = vunpack.c.0.s8 %v224
  %v226 = vlaneseq
  %v227 = vshrl.u32 %v226, 7
  %v228 = vsub.s32 %v225, %v227
  %v229 = vrot.slane %v116, %v228
  %v231 = vunpack.c.l.s4 1985246804
  %v232 = vunpack.c.0.s8 %v231
  %v233 = vlaneseq
  %v234 = vshrl.u32 %v233, 7
  %v235 = vsub.s32 %v232, %v234
  %v236 = vrot.slane %v116, %v235
  %v238 = vunpack.c.l.s4 839922192
  %v239 = vunpack.c.0.s8 %v238
  %v240 = vlaneseq
  %v241 = vshrl.u32 %v240, 7
  %v242 = vsub.s32 %v239, %v241
  %v243 = vrot.slane %v120, %v242
  %v245 = vunpack.c.l.s4 1985246804
  %v246 = vunpack.c.0.s8 %v245
  %v247 = vlaneseq
  %v248 = vshrl.u32 %v247, 7
  %v249 = vsub.s32 %v246, %v248
  %v250 = vrot.slane %v120, %v249
  %v252 = vunpack.c.l.s4 839922192
  %v253 = vunpack.c.0.s8 %v252
  %v254 = vlaneseq
  %v255 = vshrl.u32 %v254, 7
  %v256 = vsub.s32 %v253, %v255
  %v257 = vrot.slane %v124, %v256
  %v259 = vunpack.c.l.s4 1985246804
  %v260 = vunpack.c.0.s8 %v259
  %v261 = vlaneseq
  %v262 = vshrl.u32 %v261, 7
  %v263 = vsub.s32 %v260, %v262
  %v264 = vrot.slane %v124, %v263
  %v266 = vunpack.c.l.s4 839922192
  %v267 = vunpack.c.0.s8 %v266
  %v268 = vlaneseq
  %v269 = vshrl.u32 %v268, 7
  %v270 = vsub.s32 %v267, %v269
  %v271 = vrot.slane %v128, %v270
  %v273 = vunpack.c.l.s4 1985246804
  %v274 = vunpack.c.0.s8 %v273
  %v275 = vlaneseq
  %v276 = vshrl.u32 %v275, 7
  %v277 = vsub.s32 %v274, %v276
  %v278 = vrot.slane %v128, %v277
  %v280 = vunpack.c.l.s4 839922192
  %v281 = vunpack.c.0.s8 %v280
  %v282 = vlaneseq
  %v283 = vshrl.u32 %v282, 7
  %v284 = vsub.s32 %v281, %v283
  %v285 = vrot.slane %v132, %v284
  %v287 = vunpack.c.l.s4 1985246804
  %v288 = vunpack.c.0.s8 %v287
  %v289 = vlaneseq
  %v290 = vshrl.u32 %v289, 7
  %v291 = vsub.s32 %v288, %v290
  %v292 = vrot.slane %v132, %v291
  %v294 = vunpack.c.l.s4 839922192
  %v295 = vunpack.c.0.s8 %v294
  %v296 = vlaneseq
  %v297 = vshrl.u32 %v296, 7
  %v298 = vsub.s32 %v295, %v297
  %v299 = vrot.slane %v136, %v298
  %v301 = vunpack.c.l.s4 1985246804
  %v302 = vunpack.c.0.s8 %v301
  %v303 = vlaneseq
  %v304 = vshrl.u32 %v303, 7
  %v305 = vsub.s32 %v302, %v304
  %v306 = vrot.slane %v136, %v305
  %v308 = vunpack.c.l.s4 839922192
  %v309 = vunpack.c.0.s8 %v308
  %v310 = vlaneseq
  %v311 = vshrl.u32 %v310, 7
  %v312 = vsub.s32 %v309, %v311
  %v313 = vrot.slane %v140, %v312
  %v315 = vunpack.c.l.s4 1985246804
  %v316 = vunpack.c.0.s8 %v315
  %v317 = vlaneseq
  %v318 = vshrl.u32 %v317, 7
  %v319 = vsub.s32 %v316, %v318
  %v320 = vrot.slane %v140, %v319
  %v322 = vunpack.c.l.s4 839922192
  %v323 = vunpack.c.0.s8 %v322
  %v324 = vlaneseq
  %v325 = vshrl.u32 %v324, 7
  %v326 = vsub.s32 %v323, %v325
  %v327 = vrot.slane %v144, %v326
  %v329 = vunpack.c.l.s4 1985246804
  %v330 = vunpack.c.0.s8 %v329
  %v331 = vlaneseq
  %v332 = vshrl.u32 %v331, 7
  %v333 = vsub.s32 %v330, %v332
  %v334 = vrot.slane %v144, %v333
  %v336 = vunpack.c.l.s4 839922192
  %v337 = vunpack.c.0.s8 %v336
  %v338 = vlaneseq
  %v339 = vshrl.u32 %v338, 7
  %v340 = vsub.s32 %v337, %v339
  %v341 = vrot.slane %v148, %v340
  %v343 = vunpack.c.l.s4 1985246804
  %v344 = vunpack.c.0.s8 %v343
  %v345 = vlaneseq
  %v346 = vshrl.u32 %v345, 7
  %v347 = vsub.s32 %v344, %v346
  %v348 = vrot.slane %v148, %v347
  %v350 = vunpack.c.l.s4 839922192
  %v351 = vunpack.c.0.s8 %v350
  %v352 = vlaneseq
  %v353 = vshrl.u32 %v352, 7
  %v354 = vsub.s32 %v351, %v353
  %v355 = vrot.slane %v152, %v354
  %v357 = vunpack.c.l.s4 1985246804
  %v358 = vunpack.c.0.s8 %v357
  %v359 = vlaneseq
  %v360 = vshrl.u32 %v359, 7
  %v361 = vsub.s32 %v358, %v360
  %v362 = vrot.slane %v152, %v361
  %v364 = vunpack.c.l.s4 839922192
  %v365 = vunpack.c.0.s8 %v364
  %v366 = vlaneseq
  %v367 = vshrl.u32 %v366, 7
  %v368 = vsub.s32 %v365, %v367
  %v369 = vrot.slane %v156, %v368
  %v371 = vunpack.c.l.s4 1985246804
  %v372 = vunpack.c.0.s8 %v371
  %v373 = vlaneseq
  %v374 = vshrl.u32 %v373, 7
  %v375 = vsub.s32 %v372, %v374
  %v376 = vrot.slane %v156, %v375
  %v378 = vunpack.c.l.s4 839922192
  %v379 = vunpack.c.0.s8 %v378
  %v380 = vlaneseq
  %v381 = vshrl.u32 %v380, 7
  %v382 = vsub.s32 %v379, %v381
  %v383 = vrot.slane %v160, %v382
  %v385 = vunpack.c.l.s4 1985246804
  %v386 = vunpack.c.0.s8 %v385
  %v387 = vlaneseq
  %v388 = vshrl.u32 %v387, 7
  %v389 = vsub.s32 %v386, %v388
  %v390 = vrot.slane %v160, %v389
  %v392 = vunpack.c.l.s4 839922192
  %v393 = vunpack.c.0.s8 %v392
  %v394 = vlaneseq
  %v395 = vshrl.u32 %v394, 7
  %v396 = vsub.s32 %v393, %v395
  %v397 = vrot.slane %v164, %v396
  %v399 = vunpack.c.l.s4 1985246804
  %v400 = vunpack.c.0.s8 %v399
  %v401 = vlaneseq
  %v402 = vshrl.u32 %v401, 7
  %v403 = vsub.s32 %v400, %v402
  %v404 = vrot.slane %v164, %v403
  %v437 = vmul.bf16 %v21, %v187
  %v438 = vmul.bf16 %v22, %v194
  %v439 = vmul.bf16 %v23, %v201
  %v440 = vmul.bf16 %v24, %v208
  %v441 = vmul.bf16 %v25, %v215
  %v442 = vmul.bf16 %v26, %v222
  %v443 = vmul.bf16 %v27, %v229
  %v444 = vmul.bf16 %v28, %v236
  %v445 = vmul.bf16 %v29, %v243
  %v446 = vmul.bf16 %v30, %v250
  %v447 = vmul.bf16 %v31, %v257
  %v448 = vmul.bf16 %v32, %v264
  %v449 = vmul.bf16 %v33, %v271
  %v450 = vmul.bf16 %v34, %v278
  %v451 = vmul.bf16 %v35, %v285
  %v452 = vmul.bf16 %v36, %v292
  %v453 = vmul.bf16 %v37, %v299
  %v454 = vmul.bf16 %v38, %v306
  %v455 = vmul.bf16 %v39, %v313
  %v456 = vmul.bf16 %v40, %v320
  %v457 = vmul.bf16 %v41, %v327
  %v458 = vmul.bf16 %v42, %v334
  %v459 = vmul.bf16 %v43, %v341
  %v460 = vmul.bf16 %v44, %v348
  %v461 = vmul.bf16 %v45, %v355
  %v462 = vmul.bf16 %v46, %v362
  %v463 = vmul.bf16 %v47, %v369
  %v464 = vmul.bf16 %v48, %v376
  %v465 = vmul.bf16 %v49, %v383
  %v466 = vmul.bf16 %v50, %v390
  %v467 = vmul.bf16 %v51, %v397
  %v468 = vmul.bf16 %v52, %v404
  %v469 = vunpack.c.l.bf16 %v437
  %v470 = vunpack.c.l.bf16 %v438
  %v471 = vunpack.c.l.bf16 %v439
  %v472 = vunpack.c.l.bf16 %v440
  %v473 = vunpack.c.l.bf16 %v441
  %v474 = vunpack.c.l.bf16 %v442
  %v475 = vunpack.c.l.bf16 %v443
  %v476 = vunpack.c.l.bf16 %v444
  %v477 = vunpack.c.l.bf16 %v445
  %v478 = vunpack.c.l.bf16 %v446
  %v479 = vunpack.c.l.bf16 %v447
  %v480 = vunpack.c.l.bf16 %v448
  %v481 = vunpack.c.l.bf16 %v449
  %v482 = vunpack.c.l.bf16 %v450
  %v483 = vunpack.c.l.bf16 %v451
  %v484 = vunpack.c.l.bf16 %v452
  %v485 = vunpack.c.l.bf16 %v453
  %v486 = vunpack.c.l.bf16 %v454
  %v487 = vunpack.c.l.bf16 %v455
  %v488 = vunpack.c.l.bf16 %v456
  %v489 = vunpack.c.l.bf16 %v457
  %v490 = vunpack.c.l.bf16 %v458
  %v491 = vunpack.c.l.bf16 %v459
  %v492 = vunpack.c.l.bf16 %v460
  %v493 = vunpack.c.l.bf16 %v461
  %v494 = vunpack.c.l.bf16 %v462
  %v495 = vunpack.c.l.bf16 %v463
  %v496 = vunpack.c.l.bf16 %v464
  %v497 = vunpack.c.l.bf16 %v465
  %v498 = vunpack.c.l.bf16 %v466
  %v499 = vunpack.c.l.bf16 %v467
  %v500 = vunpack.c.l.bf16 %v468
  %v501 = vadd.f32 %v469, %v470
  %v502 = vrot.slane %v501, 4
  %v503 = vadd.f32 %v501, %v502
  %v504 = vrot.slane %v503, 2
  %v505 = vadd.f32 %v503, %v504
  %v506 = vrot.slane %v505, 1
  %v507 = vadd.f32 %v505, %v506
  %v508 = vadd.f32 %v471, %v472
  %v509 = vrot.slane %v508, 4
  %v510 = vadd.f32 %v508, %v509
  %v511 = vrot.slane %v510, 2
  %v512 = vadd.f32 %v510, %v511
  %v513 = vrot.slane %v512, 1
  %v514 = vadd.f32 %v512, %v513
  %v515 = vadd.f32 %v473, %v474
  %v516 = vrot.slane %v515, 4
  %v517 = vadd.f32 %v515, %v516
  %v518 = vrot.slane %v517, 2
  %v519 = vadd.f32 %v517, %v518
  %v520 = vrot.slane %v519, 1
  %v521 = vadd.f32 %v519, %v520
  %v522 = vadd.f32 %v475, %v476
  %v523 = vrot.slane %v522, 4
  %v524 = vadd.f32 %v522, %v523
  %v525 = vrot.slane %v524, 2
  %v526 = vadd.f32 %v524, %v525
  %v527 = vrot.slane %v526, 1
  %v528 = vadd.f32 %v526, %v527
  %v529 = vadd.f32 %v477, %v478
  %v530 = vrot.slane %v529, 4
  %v531 = vadd.f32 %v529, %v530
  %v532 = vrot.slane %v531, 2
  %v533 = vadd.f32 %v531, %v532
  %v534 = vrot.slane %v533, 1
  %v535 = vadd.f32 %v533, %v534
  %v536 = vadd.f32 %v479, %v480
  %v537 = vrot.slane %v536, 4
  %v538 = vadd.f32 %v536, %v537
  %v539 = vrot.slane %v538, 2
  %v540 = vadd.f32 %v538, %v539
  %v541 = vrot.slane %v540, 1
  %v542 = vadd.f32 %v540, %v541
  %v543 = vadd.f32 %v481, %v482
  %v544 = vrot.slane %v543, 4
  %v545 = vadd.f32 %v543, %v544
  %v546 = vrot.slane %v545, 2
  %v547 = vadd.f32 %v545, %v546
  %v548 = vrot.slane %v547, 1
  %v549 = vadd.f32 %v547, %v548
  %v550 = vadd.f32 %v483, %v484
  %v551 = vrot.slane %v550, 4
  %v552 = vadd.f32 %v550, %v551
  %v553 = vrot.slane %v552, 2
  %v554 = vadd.f32 %v552, %v553
  %v555 = vrot.slane %v554, 1
  %v556 = vadd.f32 %v554, %v555
  %v557 = vadd.f32 %v485, %v486
  %v558 = vrot.slane %v557, 4
  %v559 = vadd.f32 %v557, %v558
  %v560 = vrot.slane %v559, 2
  %v561 = vadd.f32 %v559, %v560
  %v562 = vrot.slane %v561, 1
  %v563 = vadd.f32 %v561, %v562
  %v564 = vadd.f32 %v487, %v488
  %v565 = vrot.slane %v564, 4
  %v566 = vadd.f32 %v564, %v565
  %v567 = vrot.slane %v566, 2
  %v568 = vadd.f32 %v566, %v567
  %v569 = vrot.slane %v568, 1
  %v570 = vadd.f32 %v568, %v569
  %v571 = vadd.f32 %v489, %v490
  %v572 = vrot.slane %v571, 4
  %v573 = vadd.f32 %v571, %v572
  %v574 = vrot.slane %v573, 2
  %v575 = vadd.f32 %v573, %v574
  %v576 = vrot.slane %v575, 1
  %v577 = vadd.f32 %v575, %v576
  %v578 = vadd.f32 %v491, %v492
  %v579 = vrot.slane %v578, 4
  %v580 = vadd.f32 %v578, %v579
  %v581 = vrot.slane %v580, 2
  %v582 = vadd.f32 %v580, %v581
  %v583 = vrot.slane %v582, 1
  %v584 = vadd.f32 %v582, %v583
  %v585 = vadd.f32 %v493, %v494
  %v586 = vrot.slane %v585, 4
  %v587 = vadd.f32 %v585, %v586
  %v588 = vrot.slane %v587, 2
  %v589 = vadd.f32 %v587, %v588
  %v590 = vrot.slane %v589, 1
  %v591 = vadd.f32 %v589, %v590
  %v592 = vadd.f32 %v495, %v496
  %v593 = vrot.slane %v592, 4
  %v594 = vadd.f32 %v592, %v593
  %v595 = vrot.slane %v594, 2
  %v596 = vadd.f32 %v594, %v595
  %v597 = vrot.slane %v596, 1
  %v598 = vadd.f32 %v596, %v597
  %v599 = vadd.f32 %v497, %v498
  %v600 = vrot.slane %v599, 4
  %v601 = vadd.f32 %v599, %v600
  %v602 = vrot.slane %v601, 2
  %v603 = vadd.f32 %v601, %v602
  %v604 = vrot.slane %v603, 1
  %v605 = vadd.f32 %v603, %v604
  %v606 = vadd.f32 %v499, %v500
  %v607 = vrot.slane %v606, 4
  %v608 = vadd.f32 %v606, %v607
  %v609 = vrot.slane %v608, 2
  %v610 = vadd.f32 %v608, %v609
  %v611 = vrot.slane %v610, 1
  %v612 = vadd.f32 %v610, %v611
  %vm613 = vcmask 7168
  %v614 = vsel %vm613, %v53, 0.0
  %v615 = vsel %vm613, %v54, 0.0
  %v616 = vadd.f32 %v614, %v615
  %v617 = vrot.slane %v616, 4
  %v618 = vadd.f32 %v616, %v617
  %v619 = vrot.slane %v618, 2
  %v620 = vadd.f32 %v618, %v619
  %v621 = vrot.slane %v620, 1
  %v622 = vadd.f32 %v620, %v621
  %v623 = vsel %vm613, %v55, 0.0
  %v624 = vsel %vm613, %v56, 0.0
  %v625 = vadd.f32 %v623, %v624
  %v626 = vrot.slane %v625, 4
  %v627 = vadd.f32 %v625, %v626
  %v628 = vrot.slane %v627, 2
  %v629 = vadd.f32 %v627, %v628
  %v630 = vrot.slane %v629, 1
  %v631 = vadd.f32 %v629, %v630
  %v632 = vsel %vm613, %v57, 0.0
  %v633 = vsel %vm613, %v58, 0.0
  %v634 = vadd.f32 %v632, %v633
  %v635 = vrot.slane %v634, 4
  %v636 = vadd.f32 %v634, %v635
  %v637 = vrot.slane %v636, 2
  %v638 = vadd.f32 %v636, %v637
  %v639 = vrot.slane %v638, 1
  %v640 = vadd.f32 %v638, %v639
  %v641 = vsel %vm613, %v59, 0.0
  %v642 = vsel %vm613, %v60, 0.0
  %v643 = vadd.f32 %v641, %v642
  %v644 = vrot.slane %v643, 4
  %v645 = vadd.f32 %v643, %v644
  %v646 = vrot.slane %v645, 2
  %v647 = vadd.f32 %v645, %v646
  %v648 = vrot.slane %v647, 1
  %v649 = vadd.f32 %v647, %v648
  %v650 = vsel %vm613, %v61, 0.0
  %v651 = vsel %vm613, %v62, 0.0
  %v652 = vadd.f32 %v650, %v651
  %v653 = vrot.slane %v652, 4
  %v654 = vadd.f32 %v652, %v653
  %v655 = vrot.slane %v654, 2
  %v656 = vadd.f32 %v654, %v655
  %v657 = vrot.slane %v656, 1
  %v658 = vadd.f32 %v656, %v657
  %v659 = vsel %vm613, %v63, 0.0
  %v660 = vsel %vm613, %v64, 0.0
  %v661 = vadd.f32 %v659, %v660
  %v662 = vrot.slane %v661, 4
  %v663 = vadd.f32 %v661, %v662
  %v664 = vrot.slane %v663, 2
  %v665 = vadd.f32 %v663, %v664
  %v666 = vrot.slane %v665, 1
  %v667 = vadd.f32 %v665, %v666
  %v668 = vsel %vm613, %v65, 0.0
  %v669 = vsel %vm613, %v66, 0.0
  %v670 = vadd.f32 %v668, %v669
  %v671 = vrot.slane %v670, 4
  %v672 = vadd.f32 %v670, %v671
  %v673 = vrot.slane %v672, 2
  %v674 = vadd.f32 %v672, %v673
  %v675 = vrot.slane %v674, 1
  %v676 = vadd.f32 %v674, %v675
  %v677 = vsel %vm613, %v67, 0.0
  %v678 = vsel %vm613, %v68, 0.0
  %v679 = vadd.f32 %v677, %v678
  %v680 = vrot.slane %v679, 4
  %v681 = vadd.f32 %v679, %v680
  %v682 = vrot.slane %v681, 2
  %v683 = vadd.f32 %v681, %v682
  %v684 = vrot.slane %v683, 1
  %v685 = vadd.f32 %v683, %v684
  %v686 = vsel %vm613, %v69, 0.0
  %v687 = vsel %vm613, %v70, 0.0
  %v688 = vadd.f32 %v686, %v687
  %v689 = vrot.slane %v688, 4
  %v690 = vadd.f32 %v688, %v689
  %v691 = vrot.slane %v690, 2
  %v692 = vadd.f32 %v690, %v691
  %v693 = vrot.slane %v692, 1
  %v694 = vadd.f32 %v692, %v693
  %v695 = vsel %vm613, %v71, 0.0
  %v696 = vsel %vm613, %v72, 0.0
  %v697 = vadd.f32 %v695, %v696
  %v698 = vrot.slane %v697, 4
  %v699 = vadd.f32 %v697, %v698
  %v700 = vrot.slane %v699, 2
  %v701 = vadd.f32 %v699, %v700
  %v702 = vrot.slane %v701, 1
  %v703 = vadd.f32 %v701, %v702
  %v704 = vsel %vm613, %v73, 0.0
  %v705 = vsel %vm613, %v74, 0.0
  %v706 = vadd.f32 %v704, %v705
  %v707 = vrot.slane %v706, 4
  %v708 = vadd.f32 %v706, %v707
  %v709 = vrot.slane %v708, 2
  %v710 = vadd.f32 %v708, %v709
  %v711 = vrot.slane %v710, 1
  %v712 = vadd.f32 %v710, %v711
  %v713 = vsel %vm613, %v75, 0.0
  %v714 = vsel %vm613, %v76, 0.0
  %v715 = vadd.f32 %v713, %v714
  %v716 = vrot.slane %v715, 4
  %v717 = vadd.f32 %v715, %v716
  %v718 = vrot.slane %v717, 2
  %v719 = vadd.f32 %v717, %v718
  %v720 = vrot.slane %v719, 1
  %v721 = vadd.f32 %v719, %v720
  %v722 = vsel %vm613, %v77, 0.0
  %v723 = vsel %vm613, %v78, 0.0
  %v724 = vadd.f32 %v722, %v723
  %v725 = vrot.slane %v724, 4
  %v726 = vadd.f32 %v724, %v725
  %v727 = vrot.slane %v726, 2
  %v728 = vadd.f32 %v726, %v727
  %v729 = vrot.slane %v728, 1
  %v730 = vadd.f32 %v728, %v729
  %v731 = vsel %vm613, %v79, 0.0
  %v732 = vsel %vm613, %v80, 0.0
  %v733 = vadd.f32 %v731, %v732
  %v734 = vrot.slane %v733, 4
  %v735 = vadd.f32 %v733, %v734
  %v736 = vrot.slane %v735, 2
  %v737 = vadd.f32 %v735, %v736
  %v738 = vrot.slane %v737, 1
  %v739 = vadd.f32 %v737, %v738
  %v740 = vsel %vm613, %v81, 0.0
  %v741 = vsel %vm613, %v82, 0.0
  %v742 = vadd.f32 %v740, %v741
  %v743 = vrot.slane %v742, 4
  %v744 = vadd.f32 %v742, %v743
  %v745 = vrot.slane %v744, 2
  %v746 = vadd.f32 %v744, %v745
  %v747 = vrot.slane %v746, 1
  %v748 = vadd.f32 %v746, %v747
  %v749 = vsel %vm613, %v83, 0.0
  %v750 = vsel %vm613, %v84, 0.0
  %v751 = vadd.f32 %v749, %v750
  %v752 = vrot.slane %v751, 4
  %v753 = vadd.f32 %v751, %v752
  %v754 = vrot.slane %v753, 2
  %v755 = vadd.f32 %v753, %v754
  %v756 = vrot.slane %v755, 1
  %v757 = vadd.f32 %v755, %v756
  %v758 = vmax.f32 %v622, 1.0
  %v759 = vmax.f32 %v631, 1.0
  %v760 = vmax.f32 %v640, 1.0
  %v761 = vmax.f32 %v649, 1.0
  %v762 = vmax.f32 %v658, 1.0
  %v763 = vmax.f32 %v667, 1.0
  %v764 = vmax.f32 %v676, 1.0
  %v765 = vmax.f32 %v685, 1.0
  %v766 = vmax.f32 %v694, 1.0
  %v767 = vmax.f32 %v703, 1.0
  %v768 = vmax.f32 %v712, 1.0
  %v769 = vmax.f32 %v721, 1.0
  %v770 = vmax.f32 %v730, 1.0
  %v771 = vmax.f32 %v739, 1.0
  %v772 = vmax.f32 %v748, 1.0
  %v773 = vmax.f32 %v757, 1.0
  %775 = vset.pattern.permute.xlu0 0
  %776 = vperm.xlu0 %775, %v758
  %v777 = vpop.permute.xlu0 %776
  %780 = vset.pattern.permute.xlu0 0
  %781 = vperm.xlu0 %780, %v759
  %v782 = vpop.permute.xlu0 %781
  %785 = vset.pattern.permute.xlu0 0
  %786 = vperm.xlu0 %785, %v760
  %v787 = vpop.permute.xlu0 %786
  %790 = vset.pattern.permute.xlu0 0
  %791 = vperm.xlu0 %790, %v761
  %v792 = vpop.permute.xlu0 %791
  %795 = vset.pattern.permute.xlu0 0
  %796 = vperm.xlu0 %795, %v762
  %v797 = vpop.permute.xlu0 %796
  %800 = vset.pattern.permute.xlu0 0
  %801 = vperm.xlu0 %800, %v763
  %v802 = vpop.permute.xlu0 %801
  %805 = vset.pattern.permute.xlu0 0
  %806 = vperm.xlu0 %805, %v764
  %v807 = vpop.permute.xlu0 %806
  %810 = vset.pattern.permute.xlu0 0
  %811 = vperm.xlu0 %810, %v765
  %v812 = vpop.permute.xlu0 %811
  %815 = vset.pattern.permute.xlu0 0
  %816 = vperm.xlu0 %815, %v766
  %v817 = vpop.permute.xlu0 %816
  %820 = vset.pattern.permute.xlu0 0
  %821 = vperm.xlu0 %820, %v767
  %v822 = vpop.permute.xlu0 %821
  %825 = vset.pattern.permute.xlu0 0
  %826 = vperm.xlu0 %825, %v768
  %v827 = vpop.permute.xlu0 %826
  %830 = vset.pattern.permute.xlu0 0
  %831 = vperm.xlu0 %830, %v769
  %v832 = vpop.permute.xlu0 %831
  %835 = vset.pattern.permute.xlu0 0
  %836 = vperm.xlu0 %835, %v770
  %v837 = vpop.permute.xlu0 %836
  %840 = vset.pattern.permute.xlu0 0
  %841 = vperm.xlu0 %840, %v771
  %v842 = vpop.permute.xlu0 %841
  %845 = vset.pattern.permute.xlu0 0
  %846 = vperm.xlu0 %845, %v772
  %v847 = vpop.permute.xlu0 %846
  %850 = vset.pattern.permute.xlu0 0
  %851 = vperm.xlu0 %850, %v773
  %v852 = vpop.permute.xlu0 %851
  %v854 = vrcp.pop %v777
  %v855 = vmul.f32 %v507, %v854
  %v856 = vrcp.pop %v782
  %v857 = vmul.f32 %v514, %v856
  %v858 = vrcp.pop %v787
  %v859 = vmul.f32 %v521, %v858
  %v860 = vrcp.pop %v792
  %v861 = vmul.f32 %v528, %v860
  %v862 = vrcp.pop %v797
  %v863 = vmul.f32 %v535, %v862
  %v864 = vrcp.pop %v802
  %v865 = vmul.f32 %v542, %v864
  %v866 = vrcp.pop %v807
  %v867 = vmul.f32 %v549, %v866
  %v868 = vrcp.pop %v812
  %v869 = vmul.f32 %v556, %v868
  %v870 = vrcp.pop %v817
  %v871 = vmul.f32 %v563, %v870
  %v872 = vrcp.pop %v822
  %v873 = vmul.f32 %v570, %v872
  %v874 = vrcp.pop %v827
  %v875 = vmul.f32 %v577, %v874
  %v876 = vrcp.pop %v832
  %v877 = vmul.f32 %v584, %v876
  %v878 = vrcp.pop %v837
  %v879 = vmul.f32 %v591, %v878
  %v880 = vrcp.pop %v842
  %v881 = vmul.f32 %v598, %v880
  %v882 = vrcp.pop %v847
  %v883 = vmul.f32 %v605, %v882
  %v884 = vrcp.pop %v852
  %v885 = vmul.f32 %v612, %v884
  %v886 = vld [vmem:[%s4] sm:$0xff]
  %v887 = vld [vmem:[%s4 + $0x8] sm:$0xff]
  %v888 = vpack.c.bf16 %v855, %v855
  %v889 = vpack.c.bf16 %v857, %v857
  %v890 = vpack.c.bf16 %v859, %v859
  %v891 = vpack.c.bf16 %v861, %v861
  %v892 = vpack.c.bf16 %v863, %v863
  %v893 = vpack.c.bf16 %v865, %v865
  %v894 = vpack.c.bf16 %v867, %v867
  %v895 = vpack.c.bf16 %v869, %v869
  %v896 = vpack.c.bf16 %v871, %v871
  %v897 = vpack.c.bf16 %v873, %v873
  %v898 = vpack.c.bf16 %v875, %v875
  %v899 = vpack.c.bf16 %v877, %v877
  %v900 = vpack.c.bf16 %v879, %v879
  %v901 = vpack.c.bf16 %v881, %v881
  %v902 = vpack.c.bf16 %v883, %v883
  %v903 = vpack.c.bf16 %v885, %v885
  %v904 = vld [vmem:[%s2] sm:$0xf]
  %v905 = vld [vmem:[%s2 + $0x4] sm:$0xf]
  %v906 = vld [vmem:[%s2 + $0x8] sm:$0xf]
  %v907 = vld [vmem:[%s2 + $0xc] sm:$0xf]
  %v908 = vld [vmem:[%s2 + $0x10] sm:$0xf]
  %v909 = vld [vmem:[%s2 + $0x14] sm:$0xf]
  %v910 = vld [vmem:[%s2 + $0x18] sm:$0xf]
  %v911 = vld [vmem:[%s2 + $0x1c] sm:$0xf]
  %v912 = vld [vmem:[%s2 + $0x20] sm:$0xf]
  %v913 = vld [vmem:[%s2 + $0x24] sm:$0xf]
  %v914 = vld [vmem:[%s2 + $0x28] sm:$0xf]
  %v915 = vld [vmem:[%s2 + $0x2c] sm:$0xf]
  %v916 = vld [vmem:[%s2 + $0x30] sm:$0xf]
  %v917 = vld [vmem:[%s2 + $0x34] sm:$0xf]
  %v918 = vld [vmem:[%s2 + $0x38] sm:$0xf]
  %v919 = vld [vmem:[%s2 + $0x3c] sm:$0xf]
  %v920 = vlaneseq
  %v921 = vshrl.u32 %v920, 7
  %v922 = vsub.s32 0, %v921
  %v923 = vrot.slane %v886, %v922
  %v940 = vunpack.c.l.b16 %v888
  %v941 = vunpack.c.l.b16 %v889
  %v942 = vunpack.c.l.b16 %v890
  %v943 = vunpack.c.l.b16 %v891
  %v944 = vunpack.c.l.b16 %v892
  %v945 = vunpack.c.l.b16 %v893
  %v946 = vunpack.c.l.b16 %v894
  %v947 = vunpack.c.l.b16 %v895
  %v948 = vunpack.c.l.b16 %v896
  %v949 = vunpack.c.l.b16 %v897
  %v950 = vunpack.c.l.b16 %v898
  %v951 = vunpack.c.l.b16 %v899
  %v952 = vunpack.c.l.b16 %v900
  %v953 = vunpack.c.l.b16 %v901
  %v954 = vunpack.c.l.b16 %v902
  %v955 = vunpack.c.l.b16 %v903
  %vm956 = vcmask 1041409
  %v957 = vsel %vm956, %v941, %v940
  %vm958 = vcmask 1042434
  %v959 = vsel %vm958, %v942, %v957
  %vm960 = vcmask 1043459
  %v961 = vsel %vm960, %v943, %v959
  %vm962 = vcmask 1044484
  %v963 = vsel %vm962, %v944, %v961
  %vm964 = vcmask 1045509
  %v965 = vsel %vm964, %v945, %v963
  %vm966 = vcmask 1046534
  %v967 = vsel %vm966, %v946, %v965
  %vm968 = vcmask 1047559
  %v969 = vsel %vm968, %v947, %v967
  %v970 = vsel %vm956, %v949, %v948
  %v971 = vsel %vm958, %v950, %v970
  %v972 = vsel %vm960, %v951, %v971
  %v973 = vsel %vm962, %v952, %v972
  %v974 = vsel %vm964, %v953, %v973
  %v975 = vsel %vm966, %v954, %v974
  %v976 = vsel %vm968, %v955, %v975
  %v977 = vpack.c.b16 %v976, %v969
  %v995 = vunpack.c.l.b16 %v904
  %v996 = vunpack.c.l.b16 %v905
  %v997 = vunpack.c.l.b16 %v906
  %v998 = vunpack.c.l.b16 %v907
  %v999 = vunpack.c.l.b16 %v908
  %v1000 = vunpack.c.l.b16 %v909
  %v1001 = vunpack.c.l.b16 %v910
  %v1002 = vunpack.c.l.b16 %v911
  %v1003 = vunpack.c.l.b16 %v912
  %v1004 = vunpack.c.l.b16 %v913
  %v1005 = vunpack.c.l.b16 %v914
  %v1006 = vunpack.c.l.b16 %v915
  %v1007 = vunpack.c.l.b16 %v916
  %v1008 = vunpack.c.l.b16 %v917
  %v1009 = vunpack.c.l.b16 %v918
  %v1010 = vunpack.c.l.b16 %v919
  %v1011 = vpack.c.b16 %v996, %v995
  %v1012 = vpack.c.b16 %v998, %v997
  %v1013 = vpack.c.b16 %v1000, %v999
  %v1014 = vpack.c.b16 %v1002, %v1001
  %v1015 = vpack.c.b16 %v1004, %v1003
  %v1016 = vpack.c.b16 %v1006, %v1005
  %v1017 = vpack.c.b16 %v1008, %v1007
  %v1018 = vpack.c.b16 %v1010, %v1009
  %1027 = vmatprep.subr.bf16.mxu0 0
  %1028 = vmatpush1.bf16.msra.mxu0 %v1011
  %1029 = vmatprep.subr.bf16.mxu0 0
  %1030 = vmatpush1.bf16.msra.mxu0 %v1012
  %1031 = vmatprep.subr.bf16.mxu0 0
  %1032 = vmatpush1.bf16.msra.mxu0 %v1013
  %1033 = vmatprep.subr.bf16.mxu0 0
  %1034 = vmatpush1.bf16.msra.mxu0 %v1014
  %1035 = vmatprep.subr.bf16.mxu0 0
  %1036 = vmatpush1.bf16.msra.mxu0 %v1015
  %1037 = vmatprep.subr.bf16.mxu0 0
  %1038 = vmatpush1.bf16.msra.mxu0 %v1016
  %1039 = vmatprep.subr.bf16.mxu0 0
  %1040 = vmatpush1.bf16.msra.mxu0 %v1017
  %1041 = vmatprep.subr.bf16.mxu0 0
  %1042 = vmatpush1.bf16.msra.mxu0 %v1018
  %1043 = vmatprep.subr.bf16.mxu0 0
  %1044 = vmatpush1.bf16.msra.mxu0 0
  %1045 = vmatprep.subr.bf16.mxu0 0
  %1046 = vmatpush1.bf16.msra.mxu0 0
  %1047 = vmatprep.subr.bf16.mxu0 0
  %1048 = vmatpush1.bf16.msra.mxu0 0
  %1049 = vmatprep.subr.bf16.mxu0 0
  %1050 = vmatpush1.bf16.msra.mxu0 0
  %1051 = vmatprep.subr.bf16.mxu0 0
  %1052 = vmatpush1.bf16.msra.mxu0 0
  %1053 = vmatprep.subr.bf16.mxu0 0
  %1054 = vmatpush1.bf16.msra.mxu0 0
  %1055 = vmatprep.subr.bf16.mxu0 0
  %1056 = vmatpush1.bf16.msra.mxu0 0
  %1057 = vmatprep.subr.bf16.mxu0 0
  %1058 = vmatpush1.bf16.msra.mxu0 0
  %1059 = vmatprep.mubr.bf16.mxu0 0
  %1060 = vmatmul.mubr.bf16.gmra.mrb[0].mxu0 %v977
  %v1061 = vpop.f32.mrb[0].mxu0
  %v1062 = vadd.f32 %v923, %v1061
  %v1063 = vpop.f32.mrb[0].mxu0
  %v1064 = vpop.f32.mrb[0].mxu0
  %v1065 = vadd.f32 %v923, %v1064
  %v1066 = vpop.f32.mrb[0].mxu0
  %1067 = vdwg.mxu0
  %v1068 = vtanh.pop %v1062
  %v1069 = vtanh.pop %v1065
  %1070 = vadd.xlane.f32.xlu0 %v1068
  %v1071 = vpop.xlane.xlu0 %1070
  %1072 = vadd.xlane.f32.xlu0 %v1069
  %v1073 = vpop.xlane.xlu0 %1072
  %v1074 = vrcp.pop 128.0
  %v1075 = vmul.f32 %v1071, %v1074
  %v1076 = vmul.f32 %v1073, %v1074
  %v1077 = vsub.f32 %v1068, %v1075
  %v1078 = vsub.f32 %v1069, %v1076
  %v1079 = vmul.f32 %v1077, %v1077
  %v1080 = vmul.f32 %v1078, %v1078
  %1081 = vadd.xlane.f32.xlu0 %v1079
  %v1082 = vpop.xlane.xlu0 %1081
  %1083 = vadd.xlane.f32.xlu0 %v1080
  %v1084 = vpop.xlane.xlu0 %1083
  %v1085 = vmul.f32 %v1082, %v1074
  %v1086 = vmul.f32 %v1084, %v1074
  %v1087 = vadd.f32 %v1085, 1e-05
  %v1088 = vadd.f32 %v1086, 1e-05
  %v1089 = vrsqrt.pop %v1087
  %v1090 = vrsqrt.pop %v1088
  %v1091 = vmul.f32 %v1077, %v1089
  %v1092 = vmul.f32 %v1078, %v1090
  %v1093 = vlaneseq
  %v1094 = vshrl.u32 %v1093, 7
  %v1095 = vsub.s32 1, %v1094
  %v1096 = vrot.slane %v886, %v1095
  %v1097 = vmul.f32 %v1091, %v1096
  %v1098 = vmul.f32 %v1092, %v1096
  %v1099 = vlaneseq
  %v1100 = vshrl.u32 %v1099, 7
  %v1101 = vsub.s32 2, %v1100
  %v1102 = vrot.slane %v886, %v1101
  %v1103 = vadd.f32 %v1097, %v1102
  %v1104 = vadd.f32 %v1098, %v1102
  %v1105 = vpack.c.bf16 %v1104, %v1103
  %v1106 = vld [vmem:[%s3] sm:$0xff]
  %v1107 = vld [vmem:[%s3 + $0x8] sm:$0xff]
  %v1108 = vld [vmem:[%s3 + $0x10] sm:$0xff]
  %v1109 = vld [vmem:[%s3 + $0x18] sm:$0xff]
  %v1110 = vld [vmem:[%s3 + $0x20] sm:$0xff]
  %v1111 = vld [vmem:[%s3 + $0x28] sm:$0xff]
  %v1112 = vld [vmem:[%s3 + $0x30] sm:$0xff]
  %v1113 = vld [vmem:[%s3 + $0x38] sm:$0xff]
  %v1114 = vld [vmem:[%s3 + $0x40] sm:$0xff]
  %v1115 = vld [vmem:[%s3 + $0x48] sm:$0xff]
  %v1116 = vld [vmem:[%s3 + $0x50] sm:$0xff]
  %v1117 = vld [vmem:[%s3 + $0x58] sm:$0xff]
  %v1118 = vld [vmem:[%s3 + $0x60] sm:$0xff]
  %v1119 = vld [vmem:[%s3 + $0x68] sm:$0xff]
  %v1120 = vld [vmem:[%s3 + $0x70] sm:$0xff]
  %v1121 = vld [vmem:[%s3 + $0x78] sm:$0xff]
  %v1122 = vlaneseq
  %v1123 = vshrl.u32 %v1122, 7
  %v1124 = vsub.s32 3, %v1123
  %v1125 = vrot.slane %v886, %v1124
  %v1126 = vlaneseq
  %v1127 = vshrl.u32 %v1126, 7
  %v1128 = vsub.s32 3, %v1127
  %v1129 = vrot.slane %v887, %v1128
  %v1146 = vunpack.c.l.b16 %v1106
  %v1147 = vunpack.c.h.b16 %v1106
  %v1148 = vunpack.c.l.b16 %v1107
  %v1149 = vunpack.c.h.b16 %v1107
  %v1150 = vunpack.c.l.b16 %v1108
  %v1151 = vunpack.c.h.b16 %v1108
  %v1152 = vunpack.c.l.b16 %v1109
  %v1153 = vunpack.c.h.b16 %v1109
  %v1154 = vunpack.c.l.b16 %v1110
  %v1155 = vunpack.c.h.b16 %v1110
  %v1156 = vunpack.c.l.b16 %v1111
  %v1157 = vunpack.c.h.b16 %v1111
  %v1158 = vunpack.c.l.b16 %v1112
  %v1159 = vunpack.c.h.b16 %v1112
  %v1160 = vunpack.c.l.b16 %v1113
  %v1161 = vunpack.c.h.b16 %v1113
  %v1162 = vunpack.c.l.b16 %v1114
  %v1163 = vunpack.c.h.b16 %v1114
  %v1164 = vunpack.c.l.b16 %v1115
  %v1165 = vunpack.c.h.b16 %v1115
  %v1166 = vunpack.c.l.b16 %v1116
  %v1167 = vunpack.c.h.b16 %v1116
  %v1168 = vunpack.c.l.b16 %v1117
  %v1169 = vunpack.c.h.b16 %v1117
  %v1170 = vunpack.c.l.b16 %v1118
  %v1171 = vunpack.c.h.b16 %v1118
  %v1172 = vunpack.c.l.b16 %v1119
  %v1173 = vunpack.c.h.b16 %v1119
  %v1174 = vunpack.c.l.b16 %v1120
  %v1175 = vunpack.c.h.b16 %v1120
  %v1176 = vunpack.c.l.b16 %v1121
  %v1177 = vunpack.c.h.b16 %v1121
  %v1178 = vpack.c.b16 %v1148, %v1146
  %v1179 = vpack.c.b16 %v1149, %v1147
  %v1180 = vpack.c.b16 %v1152, %v1150
  %v1181 = vpack.c.b16 %v1153, %v1151
  %v1182 = vpack.c.b16 %v1156, %v1154
  %v1183 = vpack.c.b16 %v1157, %v1155
  %v1184 = vpack.c.b16 %v1160, %v1158
  %v1185 = vpack.c.b16 %v1161, %v1159
  %v1186 = vpack.c.b16 %v1164, %v1162
  %v1187 = vpack.c.b16 %v1165, %v1163
  %v1188 = vpack.c.b16 %v1168, %v1166
  %v1189 = vpack.c.b16 %v1169, %v1167
  %v1190 = vpack.c.b16 %v1172, %v1170
  %v1191 = vpack.c.b16 %v1173, %v1171
  %v1192 = vpack.c.b16 %v1176, %v1174
  %v1193 = vpack.c.b16 %v1177, %v1175
  %1210 = vmatprep.subr.bf16.mxu0 %v1179
  %1211 = vmatpush1.bf16.msra.mxu0 %v1178
  %1212 = vmatprep.subr.bf16.mxu0 %v1181
  %1213 = vmatpush1.bf16.msra.mxu0 %v1180
  %1214 = vmatprep.subr.bf16.mxu0 %v1183
  %1215 = vmatpush1.bf16.msra.mxu0 %v1182
  %1216 = vmatprep.subr.bf16.mxu0 %v1185
  %1217 = vmatpush1.bf16.msra.mxu0 %v1184
  %1218 = vmatprep.subr.bf16.mxu0 %v1187
  %1219 = vmatpush1.bf16.msra.mxu0 %v1186
  %1220 = vmatprep.subr.bf16.mxu0 %v1189
  %1221 = vmatpush1.bf16.msra.mxu0 %v1188
  %1222 = vmatprep.subr.bf16.mxu0 %v1191
  %1223 = vmatpush1.bf16.msra.mxu0 %v1190
  %1224 = vmatprep.subr.bf16.mxu0 %v1193
  %1225 = vmatpush1.bf16.msra.mxu0 %v1192
  %1226 = vmatprep.subr.bf16.mxu0 0
  %1227 = vmatpush1.bf16.msra.mxu0 0
  %1228 = vmatprep.subr.bf16.mxu0 0
  %1229 = vmatpush1.bf16.msra.mxu0 0
  %1230 = vmatprep.subr.bf16.mxu0 0
  %1231 = vmatpush1.bf16.msra.mxu0 0
  %1232 = vmatprep.subr.bf16.mxu0 0
  %1233 = vmatpush1.bf16.msra.mxu0 0
  %1234 = vmatprep.subr.bf16.mxu0 0
  %1235 = vmatpush1.bf16.msra.mxu0 0
  %1236 = vmatprep.subr.bf16.mxu0 0
  %1237 = vmatpush1.bf16.msra.mxu0 0
  %1238 = vmatprep.subr.bf16.mxu0 0
  %1239 = vmatpush1.bf16.msra.mxu0 0
  %1240 = vmatprep.subr.bf16.mxu0 0
  %1241 = vmatpush1.bf16.msra.mxu0 0
  %1242 = vmatprep.mubr.bf16.mxu0 0
  %1243 = vmatmul.mubr.bf16.gmra.mrb[0].mxu0 %v1105
  %v1244 = vpop.f32.mrb[0].mxu0
  %v1245 = vadd.f32 %v1125, %v1244
  %v1246 = vpop.f32.mrb[0].mxu0
  %v1247 = vadd.f32 %v1129, %v1246
  %v1248 = vpop.f32.mrb[0].mxu0
  %v1249 = vadd.f32 %v1125, %v1248
  %v1250 = vpop.f32.mrb[0].mxu0
  %v1251 = vadd.f32 %v1129, %v1250
  %1252 = vdwg.mxu0
  %vm1253 = vcmp.gt.f32.partialorder %v1245, 0.0
  %vm1254 = vcmp.gt.f32.partialorder %v1247, 0.0
  %vm1255 = vcmp.gt.f32.partialorder %v1249, 0.0
  %vm1256 = vcmp.gt.f32.partialorder %v1251, 0.0
  %v1257 = vmul.f32 %v1245, 0.01
  %v1258 = vmul.f32 %v1247, 0.01
  %v1259 = vmul.f32 %v1249, 0.01
  %v1260 = vmul.f32 %v1251, 0.01
  %v1261 = vsel %vm1253, %v1245, %v1257
  %v1262 = vsel %vm1254, %v1247, %v1258
  %v1263 = vsel %vm1255, %v1249, %v1259
  %v1264 = vsel %vm1256, %v1251, %v1260
  %v1265 = vlaneseq
  %v1266 = vshrl.u32 %v1265, 7
  %v1267 = vsub.s32 4, %v1266
  %v1268 = vrot.slane %v886, %v1267
  %v1269 = vlaneseq
  %v1270 = vshrl.u32 %v1269, 7
  %v1271 = vsub.s32 4, %v1270
  %v1272 = vrot.slane %v887, %v1271
  %v1273 = vmul.f32 %v1261, %v1268
  %v1274 = vmul.f32 %v1262, %v1272
  %v1275 = vmul.f32 %v1263, %v1268
  %v1276 = vmul.f32 %v1264, %v1272
  %v1277 = vadd.f32 %v1273, %v1274
  %1278 = vadd.xlane.f32.xlu0 %v1277
  %v1279 = vpop.xlane.xlu0 %1278
  %v1280 = vadd.f32 %v1275, %v1276
  %1281 = vadd.xlane.f32.xlu0 %v1280
  %v1282 = vpop.xlane.xlu0 %1281
  %v1283 = vlaneseq
  %v1284 = vshrl.u32 %v1283, 7
  %v1285 = vsub.s32 5, %v1284
  %v1286 = vrot.slane %v886, %v1285
  %v1287 = vadd.f32 %v1279, %v1286
  %v1288 = vadd.f32 %v1282, %v1286
  %1290 = vset.pattern.permute.xlu0 0
  %1291 = vperm.xlu0 %1290, %v1287
  %v1292 = vpop.permute.xlu0 %1291
  %1295 = vset.pattern.permute.xlu0 0
  %1296 = vperm.xlu0 %1295, %v1288
  %v1297 = vpop.permute.xlu0 %1296
  %1299 = vst [vmem:[%s5] sm:$0xff] %v1292
  %1300 = vst [vmem:[%s5 + $0x8] sm:$0xff] %v1297
  // Predicated region
  $region22: #{_lambda_.1} parent=0 // pred_check
    _
  $region23: #{_lambda_.1} parent=0 // pred_check_branch
    %1302 = sbr.rel (0) target = $region25
  $region24: #{_lambda_.1} parent=0 // pred_region
    _
  $region25: #{_lambda_.1} parent=0 // pred_fallthru
    _
  // Predicated region
  $region26: #{_lambda_.1} parent=0 // pred_check
    _
  $region27: #{_lambda_.1} parent=0 // pred_check_branch
    %1304 = sbr.rel (0) target = $region29
  $region28: #{_lambda_.1} parent=0 // pred_region
    _
  $region29: #{_lambda_.1} parent=0 // pred_fallthru
    _

</llo_original>
